<compile_context>
chip_gen: v7x
topology: tpu7x:2x2x1
jax: 0.10.0
libtpu: 0.0.40
codegen_flags: <defaults>
</compile_context>

<pallas_src>
import numpy as np
import jax
import jax.numpy as jnp
from jax.experimental import pallas as pl
from jax.experimental.pallas import tpu as pltpu

NUM_CLASSES = 10
LANE = 128      # TPU lane width: output padded to a lane-dense 128 columns
SUBLANE = 8     # f32 sublane count


def _round_up(x: int, m: int) -> int:
    return (x + m - 1) // m * m


def _cdiv(a: int, b: int) -> int:
    return (a + b - 1) // b


def precompute_adjacency_images(image_size: int) -> np.ndarray:
    """Numpy re-implementation of GraphNet.precompute_adjacency_images."""
    col, row = np.meshgrid(np.arange(image_size), np.arange(image_size))
    coord = np.stack((col, row), axis=2).reshape(-1, 2) / image_size  # (N, 2)
    diff = coord[:, None, :] - coord[None, :, :]
    dist = np.sqrt((diff ** 2).sum(-1))          # cdist, euclidean
    sigma = 0.05 * np.pi
    A = np.exp(-dist / sigma ** 2)
    A[A < 0.01] = 0.0
    A = A.astype(np.float32)
    D = A.sum(1)
    D_hat = (D + 1e-05) ** (-0.5)
    A_hat = D_hat.reshape(-1, 1) * A * D_hat.reshape(1, -1)
    A_hat[A_hat > 0.0001] = A_hat[A_hat > 0.0001] - 0.2
    return A_hat.astype(np.float32)


def prepare_graphnet_weights(A, fc_weight):
    """One-time weight prep: fold the constant adjacency into the fc weight.

    out = (x @ A.T) @ fc_weight.T == x @ (A.T @ fc_weight.T); both A (buffer)
    and fc_weight (parameter) are static, so W_eff is precomputed once.
    Columns are zero-padded 10 -> 128 so in-kernel stores are lane-dense
    full vst (no masked partial stores).  Done once, NOT per forward call.
    """
    N = A.shape[0]
    W_eff = jnp.dot(A.T.astype(jnp.float32),
                    fc_weight.T.astype(jnp.float32))            # (N, 10)
    W_pad = jnp.zeros((N, LANE), jnp.float32).at[:, :NUM_CLASSES].set(W_eff)
    return W_pad                                                 # (N, 128)


def _fused_kernel(x_ref, w_ref, o_ref):
    """Single MXU matmul: (tb, N) @ (N, 128) -> (tb, 128). No scratch."""
    o_ref[...] = jnp.dot(x_ref[...], w_ref[...],
                         preferred_element_type=jnp.float32)


def _ktiled_kernel(x_ref, w_ref, o_ref):
    """Fallback for huge N: accumulate directly into the resident f32 output."""
    @pl.when(pl.program_id(1) == 0)
    def _():
        o_ref[...] = jnp.zeros_like(o_ref)

    o_ref[...] += jnp.dot(x_ref[...], w_ref[...],
                          preferred_element_type=jnp.float32)


def graphnet_forward(x, W_eff_pad, *, vmem_budget_bytes=40 << 20):
    """x: (B, 1, H, W) f32; W_eff_pad: (N, 128) f32 -> (B, 10) f32."""
    B = x.shape[0]
    N = W_eff_pad.shape[0]
    # row-major flatten, same element order as torch .view(B, -1)
    x_flat = x.reshape(B, N).astype(jnp.float32)

    # --- batch tiling: >=2 "parallel" programs when B >= 16 (v7x has 2 TCs) ---
    if B >= 16:
        tb = min(_round_up(_cdiv(B, 2), SUBLANE), 256)
    else:
        tb = B                       # full-extent batch block, no padding
    num_b = _cdiv(B, tb)
    B_run = num_b * tb
    if B_run != B:
        # Only pads for awkward batch sizes (B >= 16 and not a multiple of 16).
        x_in = jnp.zeros((B_run, N), jnp.float32).at[:B].set(x_flat)
    else:
        x_in = x_flat

    w_bytes = N * LANE * 4
    fused_vmem = 2 * (tb * N * 4) + 2 * w_bytes + 2 * (tb * LANE * 4)

    # Only real work / traffic: W fetched once, only 10 output columns are real.
    flops = 2 * B * N * NUM_CLASSES
    bytes_accessed = B * N * 4 + w_bytes + B * LANE * 4
    cost = pl.CostEstimate(flops=flops, transcendentals=0,
                           bytes_accessed=bytes_accessed)

    if fused_vmem <= vmem_budget_bytes:
        # ---- common path: single k step, resident W, no scratch, no x copy ----
        out = pl.pallas_call(
            _fused_kernel,
            out_shape=jax.ShapeDtypeStruct((B_run, LANE), jnp.float32),
            grid_spec=pltpu.PrefetchScalarGridSpec(
                num_scalar_prefetch=0,
                grid=(num_b,),
                in_specs=[
                    pl.BlockSpec((tb, N), lambda i: (i, 0)),        # x tile
                    pl.BlockSpec((N, LANE), lambda i: (0, 0)),      # W: fetched once
                ],
                out_specs=pl.BlockSpec((tb, LANE), lambda i: (i, 0)),
            ),
            compiler_params=pltpu.CompilerParams(
                dimension_semantics=("parallel",),
                # stay well under v7x's 64 MiB physical VMEM
                vmem_limit_bytes=min(max(fused_vmem + (4 << 20), 8 << 20),
                                     48 << 20),
            ),
            cost_estimate=cost,
        )(x_in, W_eff_pad)
    else:
        # ---- rare very-large-N path: k-tiled reduction, accumulate into o_ref ----
        tk = 2048
        N_pad = _round_up(N, tk)
        num_k = N_pad // tk
        # Zero-padding the contraction tail is exact (contributes 0 to the sum).
        x_p = jnp.zeros((B_run, N_pad), jnp.float32).at[:B, :N].set(x_flat)
        w_p = jnp.zeros((N_pad, LANE), jnp.float32).at[:N, :].set(W_eff_pad)
        out = pl.pallas_call(
            _ktiled_kernel,
            out_shape=jax.ShapeDtypeStruct((B_run, LANE), jnp.float32),
            grid_spec=pltpu.PrefetchScalarGridSpec(
                num_scalar_prefetch=0,
                grid=(num_b, num_k),
                in_specs=[
                    pl.BlockSpec((tb, tk), lambda i, k: (i, k)),
                    pl.BlockSpec((tk, LANE), lambda i, k: (k, 0)),
                ],
                out_specs=pl.BlockSpec((tb, LANE), lambda i, k: (i, 0)),
            ),
            compiler_params=pltpu.CompilerParams(
                dimension_semantics=("parallel", "arbitrary"),
                vmem_limit_bytes=48 << 20,
            ),
            cost_estimate=cost,
        )(x_p, w_p)

    return out[:B, :NUM_CLASSES]


if __name__ == "__main__":
    image_size = 16          # small spatial size
    B = 2
    N = image_size ** 2      # 256

    key = jax.random.PRNGKey(0)
    k_x, k_w = jax.random.split(key)

    # input image batch (B, 1, H, W), like PyTorch NCHW with 1 channel
    x = jax.random.normal(k_x, (B, 1, image_size, image_size), dtype=jnp.float32)

    # fc = nn.Linear(N, 10, bias=False): weight shape (10, N)
    bound = 1.0 / np.sqrt(N)
    fc_weight = jax.random.uniform(
        k_w, (10, N), dtype=jnp.float32, minval=-bound, maxval=bound)

    # precomputed normalized adjacency buffer
    A = jnp.asarray(precompute_adjacency_images(image_size))

    # one-time weight prep (constant fold A into fc weight, lane-pad to 128)
    W_eff_pad = jax.block_until_ready(prepare_graphnet_weights(A, fc_weight))

    fwd = jax.jit(graphnet_forward)
    out = fwd(x, W_eff_pad)
    out = jax.block_until_ready(out)

    # reference check in plain JAX (original two-matmul formulation)
    x_flat = x.reshape(B, N)
    ref = (x_flat @ A.T) @ fc_weight.T
    assert out.shape == (B, NUM_CLASSES)
    assert jnp.allclose(out, ref, atol=1e-4, rtol=1e-4), float(
        jnp.max(jnp.abs(out - ref)))

    print("KERNEL_OK")
</pallas_src>

<mosaic_0001>
module attributes {stable_mosaic.version = 11 : i64} {
  func.func @_fused_kernel(%arg0: i32, %arg1: memref<2x256xf32, #tpu.memory_space<vmem>>, %arg2: memref<256x128xf32, #tpu.memory_space<vmem>>, %arg3: memref<2x128xf32, #tpu.memory_space<vmem>>) attributes {dimension_semantics = [#tpu.dimension_semantics<parallel>], iteration_bounds = array<i64: 1>, scalar_prefetch = 0 : i64, scratch_operands = 0 : i64, tpu.core_type = #tpu.core_type<tc>, window_params = [{transform_indices = @transform_0, window_bounds = array<i64: 2, 256>}, {pipeline_mode = #tpu.pipeline_mode<synchronous>, transform_indices = @transform_1, window_bounds = array<i64: 256, 128>}, {transform_indices = @transform_2, window_bounds = array<i64: 2, 128>}]} {
    %c0 = arith.constant 0 : index
    %c0_0 = arith.constant 0 : index
    %0 = vector.load %arg1[%c0, %c0_0] : memref<2x256xf32, #tpu.memory_space<vmem>>, vector<2x256xf32>
    %c0_1 = arith.constant 0 : index
    %c0_2 = arith.constant 0 : index
    %1 = vector.load %arg2[%c0_1, %c0_2] : memref<256x128xf32, #tpu.memory_space<vmem>>, vector<256x128xf32>
    %cst = arith.constant dense<0.000000e+00> : vector<2x128xf32>
    %2 = tpu.matmul %0, %1, %cst {dimension_numbers = #tpu.dot_dimension_numbers<[1], [0], [0], [1], [0, 0, 1, 1], [], []>} : vector<2x256xf32>, vector<256x128xf32>, vector<2x128xf32> -> vector<2x128xf32>
    %c0_3 = arith.constant 0 : index
    %c0_4 = arith.constant 0 : index
    %3 = vector.load %arg3[%c0_3, %c0_4] : memref<2x128xf32, #tpu.memory_space<vmem>>, vector<2x128xf32>
    tpu.vector_store %arg3[%c0_3, %c0_4], %2 {strides = array<i32>} : memref<2x128xf32, #tpu.memory_space<vmem>>, vector<2x128xf32>,
    return
  }
  func.func @transform_0(%arg0: i32) -> (i32, i32) {
    %c0_i32 = arith.constant 0 : i32
    %c0_i32_0 = arith.constant 0 : i32
    return %arg0, %c0_i32 : i32, i32
  }
  func.func @transform_1(%arg0: i32) -> (i32, i32) {
    %c0_i32 = arith.constant 0 : i32
    %c0_i32_0 = arith.constant 0 : i32
    %c0_i32_1 = arith.constant 0 : i32
    return %c0_i32, %c0_i32_0 : i32, i32
  }
  func.func @transform_2(%arg0: i32) -> (i32, i32) {
    %c0_i32 = arith.constant 0 : i32
    %c0_i32_0 = arith.constant 0 : i32
    return %arg0, %c0_i32 : i32, i32
  }
}

</mosaic_0001>

<llo_original>
// kernel: graphnet_forward.1
$region0: #{graphnet_forward.1}
  #allocation0 [shape = 'u32[]', space=smem, size = 0x4, offset = 0x4, fixed_abs, tag = 'smem constant byte address 0x4 - core index']
  #allocation1 [shape = 'u32[144,128]{1,0:T(1,128)}', space=vmem, size = 0x12000, scoped, tag = 'internal scratch']
  %s0 = inlined_call_operand.vmem [shape: f32[2,256], index: 0, kind: input, shape index: {}]
  %s1 = inlined_call_operand.hbm [shape: f32[256,128], index: 1, kind: input, shape index: {}]
  %s2 = inlined_call_operand.hbm [shape: f32[2,128], index: 2, kind: output, shape index: {}]
  %s3 = sld [smem:[#allocation0]]
  $region22: #{graphnet_forward.1} parent=0
    _
  %s5 = ssub.s32 1, %s3
  %s6 = scalar_select 0, %s5, %s3
  $region1: #{graphnet_forward.1} parent=0
    #allocation2 [shape = 'u8[131072]{0}', space=vmem, size = 0x20000, scoped, tag = 'input window, operand 1, single buffered']
    #allocation3 [shape = 's32[1]{0}', space=sflag, size = 0x4, scoped, tag = 'scoped memory for graphnet_forward.1']
    #allocation4 [shape = 's32[1]{0}', space=sflag, size = 0x4, scoped, tag = 'scoped memory for graphnet_forward.1']
    #allocation5 [shape = 'u8[1024]{0}', space=vmem, size = 0x400, scoped, tag = 'output window, operand 0, single buffered']
    %7 = vsyncpa [#allocation3], 0
    %8 = vsyncpa [#allocation4], 0
    // Predicated region
    $region2: #{graphnet_forward.1} parent=1 // pred_check
      _
    $region3: #{graphnet_forward.1} parent=1 // pred_check_branch
      %10 = sbr.rel (0) target = $region5
    $region4: #{graphnet_forward.1} parent=1 // pred_region
      _
    $region5: #{graphnet_forward.1} parent=1 // pred_fallthru
      _
    // Predicated region
    $region6: #{graphnet_forward.1} parent=1 // pred_check
      _
    $region7: #{graphnet_forward.1} parent=1 // pred_check_branch
      %12 = sbr.rel (0) target = $region9
    $region8: #{graphnet_forward.1} parent=1 // pred_region
      %s14 = ssub.s32 4096, 4096
      %15 = vsyncadd [#allocation3], %s14
      %s16 = sshll.u32 [#allocation2], 4
      %s17 = int_to_ptr.vmem [resolvable:$true] %s16
      %22 = dma.hbm_to_vmem [thread:$0]  %s1, 4096, %s17, [#allocation3], 128, 128, 8
    $region9: #{graphnet_forward.1} parent=1 // pred_fallthru
      _
    // Predicated region
    $region10: #{graphnet_forward.1} parent=1 // pred_check
      _
    $region11: #{graphnet_forward.1} parent=1 // pred_check_branch
      %24 = sbr.rel (0) target = $region13
    $region12: #{graphnet_forward.1} parent=1 // pred_region
      %25 = dma.done [#allocation3], 4096
    $region13: #{graphnet_forward.1} parent=1 // pred_fallthru
      _
    %v26 = vld [vmem:[%s0] sm:$0xf]
    %v27 = vld [vmem:[#allocation2] sm:$0xff]
    %v28 = vld [vmem:[#allocation2 + $0x8] sm:$0xff]
    %v29 = vld [vmem:[#allocation2 + $0x10] sm:$0xff]
    %v30 = vld [vmem:[#allocation2 + $0x18] sm:$0xff]
    %v31 = vld [vmem:[#allocation2 + $0x20] sm:$0xff]
    %v32 = vld [vmem:[#allocation2 + $0x28] sm:$0xff]
    %v33 = vld [vmem:[#allocation2 + $0x30] sm:$0xff]
    %v34 = vld [vmem:[#allocation2 + $0x38] sm:$0xff]
    %v35 = vld [vmem:[#allocation2 + $0x40] sm:$0xff]
    %v36 = vld [vmem:[#allocation2 + $0x48] sm:$0xff]
    %v37 = vld [vmem:[#allocation2 + $0x50] sm:$0xff]
    %v38 = vld [vmem:[#allocation2 + $0x58] sm:$0xff]
    %v39 = vld [vmem:[#allocation2 + $0x60] sm:$0xff]
    %v40 = vld [vmem:[#allocation2 + $0x68] sm:$0xff]
    %v41 = vld [vmem:[#allocation2 + $0x70] sm:$0xff]
    %v42 = vld [vmem:[#allocation2 + $0x78] sm:$0xff]
    %v43 = vld [vmem:[#allocation2 + $0x80] sm:$0xff]
    %v44 = vld [vmem:[#allocation2 + $0x88] sm:$0xff]
    %v45 = vld [vmem:[#allocation2 + $0x90] sm:$0xff]
    %v46 = vld [vmem:[#allocation2 + $0x98] sm:$0xff]
    %v47 = vld [vmem:[#allocation2 + $0xa0] sm:$0xff]
    %v48 = vld [vmem:[#allocation2 + $0xa8] sm:$0xff]
    %v49 = vld [vmem:[#allocation2 + $0xb0] sm:$0xff]
    %v50 = vld [vmem:[#allocation2 + $0xb8] sm:$0xff]
    %v51 = vld [vmem:[#allocation2 + $0xc0] sm:$0xff]
    %v52 = vld [vmem:[#allocation2 + $0xc8] sm:$0xff]
    %v53 = vld [vmem:[#allocation2 + $0xd0] sm:$0xff]
    %v54 = vld [vmem:[#allocation2 + $0xd8] sm:$0xff]
    %v55 = vld [vmem:[#allocation2 + $0xe0] sm:$0xff]
    %v56 = vld [vmem:[#allocation2 + $0xe8] sm:$0xff]
    %v57 = vld [vmem:[#allocation2 + $0xf0] sm:$0xff]
    %v58 = vld [vmem:[#allocation2 + $0xf8] sm:$0xff]
    %v61 = vunpack.c.l.s4 1983009808
    %v62 = vunpack.c.0.s8 %v61
    %v63 = vlaneseq
    %v64 = vshrl.u32 %v63, 7
    %v65 = vsub.s32 %v62, %v64
    %v66 = vrot.slane %v26, %v65
    %v67 = vcombine.high %v66, %v66
    %70 = vmatprep.subr.mxu0 0.0
    %71 = vmatpush1.msra.mxu0 %v27
    %72 = vmatprep.subr.mxu0 0.0
    %73 = vmatpush1.msra.mxu0 %v28
    %74 = vmatprep.subr.mxu0 0.0
    %75 = vmatpush1.msra.mxu0 %v29
    %76 = vmatprep.subr.mxu0 0.0
    %77 = vmatpush1.msra.mxu0 %v30
    %78 = vmatprep.subr.mxu0 0.0
    %79 = vmatpush1.msra.mxu0 %v31
    %80 = vmatprep.subr.mxu0 0.0
    %81 = vmatpush1.msra.mxu0 %v32
    %82 = vmatprep.subr.mxu0 0.0
    %83 = vmatpush1.msra.mxu0 %v33
    %84 = vmatprep.subr.mxu0 0.0
    %85 = vmatpush1.msra.mxu0 %v34
    %86 = vmatprep.subr.mxu0 0.0
    %87 = vmatpush1.msra.mxu0 %v35
    %88 = vmatprep.subr.mxu0 0.0
    %89 = vmatpush1.msra.mxu0 %v36
    %90 = vmatprep.subr.mxu0 0.0
    %91 = vmatpush1.msra.mxu0 %v37
    %92 = vmatprep.subr.mxu0 0.0
    %93 = vmatpush1.msra.mxu0 %v38
    %94 = vmatprep.subr.mxu0 0.0
    %95 = vmatpush1.msra.mxu0 %v39
    %96 = vmatprep.subr.mxu0 0.0
    %97 = vmatpush1.msra.mxu0 %v40
    %98 = vmatprep.subr.mxu0 0.0
    %99 = vmatpush1.msra.mxu0 %v41
    %100 = vmatprep.subr.mxu0 0.0
    %101 = vmatpush1.msra.mxu0 %v42
    %102 = vmatprep.subr.mxu0 0.0
    %103 = vmatpush1.msra.mxu0 %v43
    %104 = vmatprep.subr.mxu0 0.0
    %105 = vmatpush1.msra.mxu0 %v44
    %106 = vmatprep.subr.mxu0 0.0
    %107 = vmatpush1.msra.mxu0 %v45
    %108 = vmatprep.subr.mxu0 0.0
    %109 = vmatpush1.msra.mxu0 %v46
    %110 = vmatprep.subr.mxu0 0.0
    %111 = vmatpush1.msra.mxu0 %v47
    %112 = vmatprep.subr.mxu0 0.0
    %113 = vmatpush1.msra.mxu0 %v48
    %114 = vmatprep.subr.mxu0 0.0
    %115 = vmatpush1.msra.mxu0 %v49
    %116 = vmatprep.subr.mxu0 0.0
    %117 = vmatpush1.msra.mxu0 %v50
    %118 = vmatprep.subr.mxu0 0.0
    %119 = vmatpush1.msra.mxu0 %v51
    %120 = vmatprep.subr.mxu0 0.0
    %121 = vmatpush1.msra.mxu0 %v52
    %122 = vmatprep.subr.mxu0 0.0
    %123 = vmatpush1.msra.mxu0 %v53
    %124 = vmatprep.subr.mxu0 0.0
    %125 = vmatpush1.msra.mxu0 %v54
    %126 = vmatprep.subr.mxu0 0.0
    %127 = vmatpush1.msra.mxu0 %v55
    %128 = vmatprep.subr.mxu0 0.0
    %129 = vmatpush1.msra.mxu0 %v56
    %130 = vmatprep.subr.mxu0 0.0
    %131 = vmatpush1.msra.mxu0 %v57
    %132 = vmatprep.subr.mxu0 0.0
    %133 = vmatpush1.msra.mxu0 %v58
    %134 = vmatprep.mubr.f32.mxu0 %v67
    %135 = vmatmul.mubr.f32.gmra.mrb[0].mxu0 %v66
    %v136 = vpop.f32.mrb[0].mxu0
    %v137 = vadd.f32 0.0, %v136
    %v138 = vpop.f32.mrb[0].mxu0
    %139 = vdwg.mxu0
    %140 = vst [vmem:[#allocation5] sm:$0x3] %v137
    // Predicated region
    $region14: #{graphnet_forward.1} parent=1 // pred_check
      _
    $region15: #{graphnet_forward.1} parent=1 // pred_check_branch
      %142 = sbr.rel (0) target = $region17
    $region16: #{graphnet_forward.1} parent=1 // pred_region
      %s144 = ssub.s32 32, 32
      %145 = vsyncadd [#allocation4], %s144
      %s147 = sshll.u32 [#allocation5], 4
      %s148 = int_to_ptr.vmem [resolvable:$true] %s147
      %150 = dma.vmem_to_hbm [thread:$0]  %s148, 32, %s2, [#allocation4]
    $region17: #{graphnet_forward.1} parent=1 // pred_fallthru
      _
    // Predicated region
    $region18: #{graphnet_forward.1} parent=1 // pred_check
      _
    $region19: #{graphnet_forward.1} parent=1 // pred_check_branch
      %152 = sbr.rel (0) target = $region21
    $region20: #{graphnet_forward.1} parent=1 // pred_region
      %153 = dma.done [#allocation4], 32
    $region21: #{graphnet_forward.1} parent=1 // pred_fallthru
      _
    %154 = vsyncpa [#allocation3], 1
    %155 = vsyncpa [#allocation4], 1

</llo_original>
